<compile_context>
chip_gen: v6e
topology: v6e:2x2x1
jax: 0.10.0
libtpu: 0.0.40
codegen_flags: <defaults>
</compile_context>

<pallas_src>
import jax
import jax.numpy as jnp
from jax.experimental import pallas as pl
from jax.experimental.pallas import tpu as pltpu


def _conv_prelu_kernel(x_ref, w_ref, b_ref, a_ref, out_ref):
    # x_ref  : (1, 9*C, TS)  bf16  im2col patches tile (lane-dense spatial axis)
    # w_ref  : (OC, 9*C)     bf16  repacked conv weights
    # b_ref  : (OC, 1)       f32   conv bias
    # a_ref  : (1,)          f32   PReLU slope (single shared parameter), SMEM
    # out_ref: (1, OC, TS)   f32   conv + bias + PReLU output (pre-pixel-shuffle)
    alpha = a_ref[0]
    acc = jnp.dot(w_ref[...], x_ref[0], preferred_element_type=jnp.float32)
    acc = acc + b_ref[...]                       # bias, broadcast over lanes
    acc = jnp.where(acc >= 0, acc, alpha * acc)  # PReLU (single parameter)
    out_ref[0] = acc.astype(out_ref.dtype)


def _pick_spatial_tile(hw, c, oc, budget_bytes=8 << 20):
    """Largest 128-multiple spatial tile that divides H*W and fits the budget."""
    per_col = 9 * c * 2 + oc * 4            # bf16 patches + f32 output, per column
    max_ts = max(128, budget_bytes // (2 * per_col))  # 2x for double-buffering
    if hw <= max_ts:
        return hw
    t = (max_ts // 128) * 128
    while t >= 128:
        if hw % t == 0:
            return t
        t -= 128
    return hw  # fallback: no 128-aligned divisor -> take the whole row


def upsample_block_wdsr(x, weight, bias, prelu_alpha, upscale):
    """x: (N, C, H, W) f32. weight: (OC, C, 3, 3), OC = C * upscale**2."""
    N, C, H, W = x.shape
    OC = weight.shape[0]
    r = upscale
    assert OC == C * r * r
    HW = H * W

    # ---- glue: im2col (tap-major, channel-minor) -> (N, 9*C, H*W) ------------
    xpad = jnp.pad(x, ((0, 0), (0, 0), (1, 1), (1, 1)))
    cols = []
    for ky in range(3):
        for kx in range(3):
            cols.append(xpad[:, :, ky:ky + H, kx:kx + W].reshape(N, C, HW))
    patches = jnp.concatenate(cols, axis=1).astype(jnp.bfloat16)  # (N, 9C, HW)

    # weight[o, c, ky, kx] -> w2[o, (ky*3+kx)*C + c]  (matches patches layout)
    w2 = weight.transpose(0, 2, 3, 1).reshape(OC, 9 * C).astype(jnp.bfloat16)
    b_col = bias.reshape(OC, 1).astype(jnp.float32)
    alpha = jnp.asarray(prelu_alpha, jnp.float32).reshape(1)

    TS = _pick_spatial_tile(HW, C, OC)
    n_s = HW // TS

    conv_out = pl.pallas_call(
        _conv_prelu_kernel,
        out_shape=jax.ShapeDtypeStruct((N, OC, HW), jnp.float32),
        grid_spec=pltpu.PrefetchScalarGridSpec(
            num_scalar_prefetch=0,
            grid=(N, n_s),
            in_specs=[
                pl.BlockSpec((1, 9 * C, TS), lambda n, s: (n, 0, s)),
                pl.BlockSpec((OC, 9 * C), lambda n, s: (0, 0)),
                pl.BlockSpec((OC, 1), lambda n, s: (0, 0)),
                pl.BlockSpec(memory_space=pltpu.MemorySpace.SMEM),
            ],
            out_specs=pl.BlockSpec((1, OC, TS), lambda n, s: (n, 0, s)),
        ),
        compiler_params=pltpu.CompilerParams(
            dimension_semantics=("parallel", "parallel"),
            vmem_limit_bytes=32 * 1024 * 1024,
        ),
    )(patches, w2, b_col, alpha)

    # ---- glue: PixelShuffle(r): (N, C*r^2, H*W) -> (N, C, H*r, W*r) ----------
    y = conv_out.reshape(N, C, r, r, H, W)
    y = y.transpose(0, 1, 4, 2, 5, 3)
    y = y.reshape(N, C, H * r, W * r)
    return y


def _reference(x, weight, bias, prelu_alpha, upscale):
    out = jax.lax.conv_general_dilated(
        x, weight, window_strides=(1, 1), padding="SAME",
        dimension_numbers=("NCHW", "OIHW", "NCHW"))
    out = out + bias.reshape(1, -1, 1, 1)
    N, OC, H, W = out.shape
    r = upscale
    C = OC // r ** 2
    y = out.reshape(N, C, r, r, H, W).transpose(0, 1, 4, 2, 5, 3)
    y = y.reshape(N, C, H * r, W * r)
    return jnp.where(y >= 0, y, prelu_alpha * y)


if __name__ == "__main__":
    key = jax.random.PRNGKey(0)
    k_x, k_w, k_b = jax.random.split(key, 3)

    N, C, H, W = 2, 4, 16, 16
    upscale = 2
    OC = C * upscale ** 2

    x = jax.random.normal(k_x, (N, C, H, W), jnp.float32)
    weight = jax.random.normal(k_w, (OC, C, 3, 3), jnp.float32) * 0.1
    bias = jax.random.normal(k_b, (OC,), jnp.float32) * 0.1
    prelu_alpha = jnp.float32(0.25)  # PyTorch PReLU default init

    y = upsample_block_wdsr(x, weight, bias, prelu_alpha, upscale)
    y = jax.block_until_ready(y)

    y_ref = _reference(x, weight, bias, prelu_alpha, upscale)
    assert y.shape == (N, C, H * upscale, W * upscale)
    # bf16 matmul inputs with f32 accumulation -> relaxed tolerance vs f32 ref.
    max_err = float(jnp.max(jnp.abs(y - y_ref)))
    assert jnp.allclose(y, y_ref, atol=2e-2, rtol=2e-2), \
        f"mismatch vs reference, max abs err = {max_err}"

    print("KERNEL_OK")
</pallas_src>

<mosaic_0001>
module attributes {stable_mosaic.version = 11 : i64} {
  func.func @_conv_prelu_kernel(%arg0: i32, %arg1: i32, %arg2: memref<1x36x256xbf16, #tpu.memory_space<vmem>>, %arg3: memref<16x36xbf16, #tpu.memory_space<vmem>>, %arg4: memref<16x1xf32, #tpu.memory_space<vmem>>, %arg5: memref<1xf32, #tpu.memory_space<smem>>, %arg6: memref<1x16x256xf32, #tpu.memory_space<vmem>>) attributes {dimension_semantics = [#tpu.dimension_semantics<parallel>, #tpu.dimension_semantics<parallel>], iteration_bounds = array<i64: 2, 1>, scalar_prefetch = 0 : i64, scratch_operands = 0 : i64, tpu.core_type = #tpu.core_type<tc>, window_params = [{transform_indices = @transform_0, window_bounds = array<i64: 1, 36, 256>}, {pipeline_mode = #tpu.pipeline_mode<synchronous>, transform_indices = @transform_1, window_bounds = array<i64: 16, 36>}, {pipeline_mode = #tpu.pipeline_mode<synchronous>, transform_indices = @transform_2, window_bounds = array<i64: 16, 1>}, {transform_indices = @transform_3, window_bounds = array<i64: 1>}, {transform_indices = @transform_4, window_bounds = array<i64: 1, 16, 256>}]} {
    %c0 = arith.constant 0 : index
    %0 = memref.load %arg5[%c0] : memref<1xf32, #tpu.memory_space<smem>>
    %c0_0 = arith.constant 0 : index
    %c0_1 = arith.constant 0 : index
    %1 = vector.load %arg3[%c0_0, %c0_1] : memref<16x36xbf16, #tpu.memory_space<vmem>>, vector<16x36xbf16>
    %c0_2 = arith.constant 0 : index
    %c0_3 = arith.constant 0 : index
    %c0_4 = arith.constant 0 : index
    %2 = vector.load %arg2[%c0_2, %c0_3, %c0_4] : memref<1x36x256xbf16, #tpu.memory_space<vmem>>, vector<1x36x256xbf16>
    %3 = vector.shape_cast %2 : vector<1x36x256xbf16> to vector<36x256xbf16>
    %cst = arith.constant dense<0.000000e+00> : vector<16x256xf32>
    %4 = tpu.matmul %1, %3, %cst {dimension_numbers = #tpu.dot_dimension_numbers<[1], [0], [0], [1], [0, 0, 1, 1], [], []>} : vector<16x36xbf16>, vector<36x256xbf16>, vector<16x256xf32> -> vector<16x256xf32>
    %c0_5 = arith.constant 0 : index
    %c0_6 = arith.constant 0 : index
    %5 = vector.load %arg4[%c0_5, %c0_6] : memref<16x1xf32, #tpu.memory_space<vmem>>, vector<16x1xf32>
    %6 = vector.broadcast %5 : vector<16x1xf32> to vector<16x256xf32>
    %7 = arith.addf %4, %6 : vector<16x256xf32>
    %cst_7 = arith.constant 0.000000e+00 : f32
    %8 = vector.broadcast %cst_7 : f32 to vector<16x256xf32>
    %9 = arith.cmpf oge, %7, %8 : vector<16x256xf32>
    %10 = vector.broadcast %0 : f32 to vector<16x256xf32>
    %11 = arith.mulf %10, %7 : vector<16x256xf32>
    %12 = arith.select %9, %7, %11 : vector<16x256xi1>, vector<16x256xf32>
    %c0_8 = arith.constant 0 : index
    %c0_9 = arith.constant 0 : index
    %c0_10 = arith.constant 0 : index
    %13 = vector.load %arg6[%c0_8, %c0_9, %c0_10] : memref<1x16x256xf32, #tpu.memory_space<vmem>>, vector<1x16x256xf32>
    %14 = vector.shape_cast %13 : vector<1x16x256xf32> to vector<16x256xf32>
    %15 = vector.shape_cast %12 : vector<16x256xf32> to vector<1x16x256xf32>
    tpu.vector_store %arg6[%c0_8, %c0_9, %c0_10], %15 {strides = array<i32>} : memref<1x16x256xf32, #tpu.memory_space<vmem>>, vector<1x16x256xf32>,
    return
  }
  func.func @transform_0(%arg0: i32, %arg1: i32) -> (i32, i32, i32) {
    %c0_i32 = arith.constant 0 : i32
    %c0_i32_0 = arith.constant 0 : i32
    return %arg0, %c0_i32, %arg1 : i32, i32, i32
  }
  func.func @transform_1(%arg0: i32, %arg1: i32) -> (i32, i32) {
    %c0_i32 = arith.constant 0 : i32
    %c0_i32_0 = arith.constant 0 : i32
    %c0_i32_1 = arith.constant 0 : i32
    return %c0_i32, %c0_i32_0 : i32, i32
  }
  func.func @transform_2(%arg0: i32, %arg1: i32) -> (i32, i32) {
    %c0_i32 = arith.constant 0 : i32
    %c0_i32_0 = arith.constant 0 : i32
    %c0_i32_1 = arith.constant 0 : i32
    return %c0_i32, %c0_i32_0 : i32, i32
  }
  func.func @transform_3(%arg0: i32, %arg1: i32) -> i32 {
    %c0_i32 = arith.constant 0 : i32
    %c0_i32_0 = arith.constant 0 : i32
    return %c0_i32 : i32
  }
  func.func @transform_4(%arg0: i32, %arg1: i32) -> (i32, i32, i32) {
    %c0_i32 = arith.constant 0 : i32
    %c0_i32_0 = arith.constant 0 : i32
    return %arg0, %c0_i32, %arg1 : i32, i32, i32
  }
}

</mosaic_0001>

<llo_original>
// kernel: tpu_custom_call.1
$region0: #{tpu_custom_call.1}
  #allocation0 [shape = 'u32[]', space=smem, size = 0x4, offset = 0x4, fixed_abs, tag = 'smem constant byte address 0x4 - core index']
  #allocation1 [shape = 'u32[144,128]{1,0:T(1,128)}', space=vmem, size = 0x12000, scoped, tag = 'internal scratch']
  #allocation2 [shape = 'f32[1]{0:T(128)S(6)}', space=smem, size = 0x200, scoped, tag = 'scoped memory for tpu_custom_call.1']
  %s0 = inlined_call_operand.vmem [shape: bf16[2,36,256], index: 0, kind: input, shape index: {}]
  %s1 = inlined_call_operand.vmem [shape: bf16[16,36], index: 1, kind: input, shape index: {}]
  %s2 = inlined_call_operand.vmem [shape: f32[16,1], index: 2, kind: input, shape index: {}]
  %s3 = inlined_call_operand.<no memory space> [shape: f32[1], index: 3, kind: input, shape index: {}]
  %s4 = inlined_call_operand.hbm [shape: f32[2,16,256], index: 4, kind: output, shape index: {}]
  %s5 = sld [smem:[#allocation0]]
  $region49: #{tpu_custom_call.1} parent=0
    _
  %s7 = ssub.s32 1, %s5
  %s8 = scalar_select 0, %s7, %s5
  %9 = sst [smem:[#allocation2]] %s3
  $region1: #{tpu_custom_call.1} parent=0
    #allocation3 [shape = 'u8[32768]{0}', space=vmem, size = 0x8000, scoped, tag = 'output window, operand 0']
    #allocation4 [shape = 's32[2]{0}', space=sflag, size = 0x8, scoped, tag = 'scoped memory for tpu_custom_call.1']
    %10 = vsyncpa [#allocation4], 0
    %s11 = scalar_lea.sflag [#allocation4], 1
    %12 = vsyncpa %s11, 0
    loop: start=0, step=1, limit=4
    $region2: #{tpu_custom_call.1} parent=1 // loop_pre_header
      _
    $region3: #{tpu_custom_call.1} parent=1 // loop_header
      %s14 = sphi 0, %s18
      %p15 = scmp.ge.s32.totalorder %s14, 4
      %s21 = sphi 0, %s33
      %s22 = sphi 0, %s29
      %s23 = sphi 0, %s21
      %s24 = sphi 0, %s22
      %s25 = sphi 0, %s23
      %s26 = sphi 0, %s24
      %s38 = sphi 0, %s40
      %s41 = sphi 0, %s38
      %s42 = sphi 0, %s41
      %s58 = sphi 0, %s42
      %s62 = sphi 0, %s62
      %s64 = sphi 0, %s62
      %s65 = sphi 0, %s64
      %s79 = sphi 0, %s65
      %s83 = sphi 0, %s83
      %s85 = sphi 0, %s83
      %s86 = sphi 0, %s85
      %s100 = sphi 0, %s86
      %s104 = sphi 0, %s104
      %s106 = sphi 0, %s104
      %s107 = sphi 0, %s106
      %s121 = sphi 0, %s107
      %s129 = sphi 0, %s131
      %s132 = sphi 0, %s129
      %s133 = sphi 0, %s132
      %s149 = sphi 0, %s133
    $region4: #{tpu_custom_call.1} parent=1 // loop_header_branch
      %17 = sbr.rel (%p15) target = $region8
    $region5: #{tpu_custom_call.1} parent=1 // loop_body
      %s19 = ssub.s32 %s14, 1
      %s20 = ssub.s32 %s14, 2
      %s27 = sadd.s32 1, %s22
      %p28 = scmp.ge.s32.totalorder %s27, 1
      %s29 = scalar_select %p28, 0, %s27
      %s30 = sadd.s32 1, %s21
      %s31 = scalar_select %p28, %s30, %s21
      %p32 = scmp.ge.s32.totalorder %s31, 2
      %s33 = scalar_select %p32, 0, %s31
      %s34 = ssub.s32 %s21, %s33
      %s35 = ssub.s32 %s22, %s29
      %s36 = sor.u32 %s34, %s35
      %p37 = scmp.eq.s32.totalorder %s36, 0
      %s39 = sadd.s32 %s38, 1
      %s40 = scalar_select %p37, %s38, %s39
      %p43 = pneg %p37
      %p44 = scmp.eq.s32.totalorder %s14, 1
      %p45 = por %p43, %p44
      %p46 = scmp.ne.s32.totalorder %s38, %s41
      %p47 = scmp.eq.s32.totalorder %s14, 0
      %p48 = por %p46, %p47
      %p49 = scmp.ne.s32.totalorder %s38, %s41
      %p50 = scmp.eq.s32.totalorder %s19, 1
      %p51 = por %p49, %p50
      %p52 = scmp.ne.s32.totalorder %s41, %s42
      %p53 = scmp.eq.s32.totalorder %s19, 0
      %p54 = por %p52, %p53
      %p55 = scmp.ne.s32.totalorder %s41, %s42
      %p56 = scmp.eq.s32.totalorder %s20, 1
      %p57 = por %p55, %p56
      %p59 = scmp.ne.s32.totalorder %s42, %s58
      %p60 = scmp.eq.s32.totalorder %s20, 0
      %p61 = por %p59, %p60
      %s63 = sadd.s32 %s62, 1
      %p66 = scmp.eq.s32.totalorder %s14, 1
      %p67 = scmp.ne.s32.totalorder %s62, %s64
      %p68 = scmp.eq.s32.totalorder %s14, 0
      %p69 = por %p67, %p68
      %p70 = scmp.ne.s32.totalorder %s62, %s64
      %p71 = scmp.eq.s32.totalorder %s19, 1
      %p72 = por %p70, %p71
      %p73 = scmp.ne.s32.totalorder %s64, %s65
      %p74 = scmp.eq.s32.totalorder %s19, 0
      %p75 = por %p73, %p74
      %p76 = scmp.ne.s32.totalorder %s64, %s65
      %p77 = scmp.eq.s32.totalorder %s20, 1
      %p78 = por %p76, %p77
      %p80 = scmp.ne.s32.totalorder %s65, %s79
      %p81 = scmp.eq.s32.totalorder %s20, 0
      %p82 = por %p80, %p81
      %s84 = sadd.s32 %s83, 1
      %p87 = scmp.eq.s32.totalorder %s14, 1
      %p88 = scmp.ne.s32.totalorder %s83, %s85
      %p89 = scmp.eq.s32.totalorder %s14, 0
      %p90 = por %p88, %p89
      %p91 = scmp.ne.s32.totalorder %s83, %s85
      %p92 = scmp.eq.s32.totalorder %s19, 1
      %p93 = por %p91, %p92
      %p94 = scmp.ne.s32.totalorder %s85, %s86
      %p95 = scmp.eq.s32.totalorder %s19, 0
      %p96 = por %p94, %p95
      %p97 = scmp.ne.s32.totalorder %s85, %s86
      %p98 = scmp.eq.s32.totalorder %s20, 1
      %p99 = por %p97, %p98
      %p101 = scmp.ne.s32.totalorder %s86, %s100
      %p102 = scmp.eq.s32.totalorder %s20, 0
      %p103 = por %p101, %p102
      %s105 = sadd.s32 %s104, 1
      %p108 = scmp.eq.s32.totalorder %s14, 1
      %p109 = scmp.ne.s32.totalorder %s104, %s106
      %p110 = scmp.eq.s32.totalorder %s14, 0
      %p111 = por %p109, %p110
      %p112 = scmp.ne.s32.totalorder %s104, %s106
      %p113 = scmp.eq.s32.totalorder %s19, 1
      %p114 = por %p112, %p113
      %p115 = scmp.ne.s32.totalorder %s106, %s107
      %p116 = scmp.eq.s32.totalorder %s19, 0
      %p117 = por %p115, %p116
      %p118 = scmp.ne.s32.totalorder %s106, %s107
      %p119 = scmp.eq.s32.totalorder %s20, 1
      %p120 = por %p118, %p119
      %p122 = scmp.ne.s32.totalorder %s107, %s121
      %p123 = scmp.eq.s32.totalorder %s20, 0
      %p124 = por %p122, %p123
      %s125 = ssub.s32 %s21, %s33
      %s126 = ssub.s32 %s22, %s29
      %s127 = sor.u32 %s125, %s126
      %p128 = scmp.eq.s32.totalorder %s127, 0
      %s130 = sadd.s32 %s129, 1
      %s131 = scalar_select %p128, %s129, %s130
      %p134 = pneg %p128
      %p135 = scmp.eq.s32.totalorder %s14, 1
      %p136 = por %p134, %p135
      %p137 = scmp.ne.s32.totalorder %s129, %s132
      %p138 = scmp.eq.s32.totalorder %s14, 0
      %p139 = por %p137, %p138
      %p140 = scmp.ne.s32.totalorder %s129, %s132
      %p141 = scmp.eq.s32.totalorder %s19, 1
      %p142 = por %p140, %p141
      %p143 = scmp.ne.s32.totalorder %s132, %s133
      %p144 = scmp.eq.s32.totalorder %s19, 0
      %p145 = por %p143, %p144
      %p146 = scmp.ne.s32.totalorder %s132, %s133
      %p147 = scmp.eq.s32.totalorder %s20, 1
      %p148 = por %p146, %p147
      %p150 = scmp.ne.s32.totalorder %s133, %s149
      %p151 = scmp.eq.s32.totalorder %s20, 0
      %p152 = por %p150, %p151
      %p153 = scmp.le.s32.totalorder 1, %s14
      %p154 = scmp.lt.s32.totalorder %s14, 3
      %p155 = pnand %p153, %p154
      %p156 = pneg %p155
      // Predicated region
      $region9: #{tpu_custom_call.1} parent=5 // pred_check
        _
      $region10: #{tpu_custom_call.1} parent=5 // pred_check_branch
        %158 = sbr.rel (%p155) target = $region12
      $region11: #{tpu_custom_call.1} parent=5 // pred_region
        %s159 = ssub.s32 %s14, 1
        // Predicated region
        $region13: #{tpu_custom_call.1} parent=11 // pred_check
          %p160 = pneg %p75
        $region14: #{tpu_custom_call.1} parent=11 // pred_check_branch
          %162 = sbr.rel (%p160) target = $region16
        $region15: #{tpu_custom_call.1} parent=11 // pred_region
          _
        $region16: #{tpu_custom_call.1} parent=11 // pred_fallthru
          _
        // Predicated region
        $region17: #{tpu_custom_call.1} parent=11 // pred_check
          %p163 = pneg %p96
        $region18: #{tpu_custom_call.1} parent=11 // pred_check_branch
          %165 = sbr.rel (%p163) target = $region20
        $region19: #{tpu_custom_call.1} parent=11 // pred_region
          _
        $region20: #{tpu_custom_call.1} parent=11 // pred_fallthru
          _
        // Predicated region
        $region21: #{tpu_custom_call.1} parent=11 // pred_check
          %p166 = pneg %p117
        $region22: #{tpu_custom_call.1} parent=11 // pred_check_branch
          %168 = sbr.rel (%p166) target = $region24
        $region23: #{tpu_custom_call.1} parent=11 // pred_region
          _
        $region24: #{tpu_custom_call.1} parent=11 // pred_fallthru
          _
      $region12: #{tpu_custom_call.1} parent=5 // pred_fallthru
        _
      %p169 = scmp.lt.s32.totalorder %s14, 2
      // Predicated region
      $region25: #{tpu_custom_call.1} parent=5 // pred_check
        %p170 = pneg %p169
      $region26: #{tpu_custom_call.1} parent=5 // pred_check_branch
        %172 = sbr.rel (%p170) target = $region28
      $region27: #{tpu_custom_call.1} parent=5 // pred_region
        // Predicated region
        $region29: #{tpu_custom_call.1} parent=27 // pred_check
          %p173 = pneg %p48
        $region30: #{tpu_custom_call.1} parent=27 // pred_check_branch
          %175 = sbr.rel (%p173) target = $region32
        $region31: #{tpu_custom_call.1} parent=27 // pred_region
          %s176 = smul.u32 2, %s22
          %p177 = scmp.lt.s32.totalorder %s21, 1
          %s178 = scalar_select %p177, %s21, 1
          %p179 = scmp.lt.s32.totalorder %s176, 1
          %s180 = scalar_select %p179, %s176, 1
          %s181 = smul.addr %s178, 10
          %s182 = sadd.s32 %s180, %s181
          %s183 = smul.addr %s182, 4
          %s184 = scalar_lea.vmem %s0, %s183
          %s185 = smul.u32 2, %s22
        $region32: #{tpu_custom_call.1} parent=27 // pred_fallthru
          _
      $region28: #{tpu_custom_call.1} parent=5 // pred_fallthru
        _
      %p186 = scmp.le.s32.totalorder 1, %s14
      %p187 = scmp.lt.s32.totalorder %s14, 3
      %p188 = pnand %p186, %p187
      %p189 = pneg %p188
      // Predicated region
      $region33: #{tpu_custom_call.1} parent=5 // pred_check
        _
      $region34: #{tpu_custom_call.1} parent=5 // pred_check_branch
        %191 = sbr.rel (%p188) target = $region36
      $region35: #{tpu_custom_call.1} parent=5 // pred_region
        %s192 = ssub.s32 %s14, 1
        %s193 = smul.u32 2, %s24
        %p194 = scmp.lt.s32.totalorder %s23, 1
        %s195 = scalar_select %p194, %s23, 1
        %p196 = scmp.lt.s32.totalorder %s193, 1
        %s197 = scalar_select %p196, %s193, 1
        %s198 = smul.addr %s195, 10
        %s199 = sadd.s32 %s197, %s198
        %s200 = smul.addr %s199, 4
        %s201 = scalar_lea.vmem %s0, %s200
        %p202 = pneg %p54
        %p203 = pneg %p51
        %p204 = pneg %p75
        %p205 = pneg %p72
        %p206 = pneg %p96
        %p207 = pneg %p93
        %p208 = pneg %p117
        %p209 = pneg %p114
        %p210 = pneg %p145
        %p211 = pneg %p142
        %s212 = sand.u32 %s132, 1
        %s213 = scalar_lea.sflag [#allocation4], %s212
        %s214 = sand.u32 %s132, 1
        %s215 = smul.addr %s214, 32
        %s216 = scalar_lea.vmem [#allocation3], %s215
        %s217 = smul.u32 2, %s24
        %p218 = scmp.lt.s32.totalorder %s23, 1
        %s219 = scalar_select %p218, %s23, 1
        %p220 = scmp.lt.s32.totalorder %s217, 1
        %s221 = scalar_select %p220, %s217, 1
        %s222 = smul.addr %s219, 10
        %s223 = sadd.s32 %s221, %s222
        %s224 = smul.addr %s223, 4
        %s225 = scalar_lea.vmem %s0, %s224
        %s226 = smul.u32 2, %s24
        %s227 = smul.u32 2, %s24
        %s229 = sld [smem:[#allocation2]]
        %v230 = vld [vmem:[%s1] sm:$0xf]
        %v231 = vld [vmem:[%s1 + $0x4] sm:$0xf]
        %v232 = vld [vmem:[%s225] sm:$0xff]
        %v233 = vld [vmem:[%s225 + $0x8] sm:$0xff]
        %v234 = vld [vmem:[%s225 + $0x10] sm:$0xff]
        %v235 = vld [vmem:[%s225 + $0x18] sm:$0xff]
        %v236 = vld [vmem:[%s225 + $0x20] sm:$0x33]
        %v237 = vld [vmem:[%s2] sm:$0xff]
        %v238 = vld [vmem:[%s2 + $0x8] sm:$0xff]
        %240 = vset.pattern.permute.xlu0 0
        %241 = vperm.xlu0 %240, %v237
        %v242 = vpop.permute.xlu0 %241
        %245 = vset.pattern.permute.xlu0 0
        %246 = vperm.xlu0 %245, %v238
        %v247 = vpop.permute.xlu0 %246
        %v251 = vunpack.c.l.b16 %v230
        %v252 = vunpack.c.l.b16 %v231
        %v253 = vpack.c.b16 %v252, %v251
        %v259 = vunpack.c.l.b16 %v232
        %v260 = vunpack.c.h.b16 %v232
        %v261 = vunpack.c.l.b16 %v233
        %v262 = vunpack.c.h.b16 %v233
        %v263 = vunpack.c.l.b16 %v234
        %v264 = vunpack.c.h.b16 %v234
        %v265 = vunpack.c.l.b16 %v235
        %v266 = vunpack.c.h.b16 %v235
        %v267 = vunpack.c.l.b16 %v236
        %v268 = vunpack.c.h.b16 %v236
        %v269 = vpack.c.b16 %v261, %v259
        %v270 = vpack.c.b16 %v262, %v260
        %v271 = vpack.c.b16 %v265, %v263
        %v272 = vpack.c.b16 %v266, %v264
        %v273 = vpack.c.b16 %v267, %v267
        %v274 = vpack.c.b16 %v268, %v268
        %vm279 = vcmask 293888
        %v281 = vsel %vm279, %v253, 0
        %vm283 = vcmask 1041408
        %v285 = vsel %vm283, %v273, 0
        %v288 = vsel %vm283, %v274, 0
        %290 = vmatprep.subr.bf16.mxu0 0
        %291 = vmatpush1.bf16.msra.mxu0 0
        %292 = vmatprep.subr.bf16.mxu0 0
        %293 = vmatpush1.bf16.msra.mxu0 0
        %294 = vmatprep.subr.bf16.mxu0 0
        %295 = vmatpush1.bf16.msra.mxu0 0
        %296 = vmatprep.subr.bf16.mxu0 0
        %297 = vmatpush1.bf16.msra.mxu0 0
        %298 = vmatprep.subr.bf16.mxu0 0
        %299 = vmatpush1.bf16.msra.mxu0 0
        %300 = vmatprep.subr.bf16.mxu0 %v288
        %301 = vmatpush1.bf16.msra.mxu0 %v285
        %302 = vmatprep.subr.bf16.mxu0 %v272
        %303 = vmatpush1.bf16.msra.mxu0 %v271
        %304 = vmatprep.subr.bf16.mxu0 %v270
        %305 = vmatpush1.bf16.msra.mxu0 %v269
        %306 = vmatprep.subr.bf16.mxu0 0
        %307 = vmatpush2.bf16.msra.mxu0 0
        %308 = vmatprep.subr.bf16.mxu0 0
        %309 = vmatpush2.bf16.msra.mxu0 0
        %310 = vmatprep.subr.bf16.mxu0 0
        %311 = vmatpush2.bf16.msra.mxu0 0
        %312 = vmatprep.subr.bf16.mxu0 0
        %313 = vmatpush2.bf16.msra.mxu0 0
        %314 = vmatprep.subr.bf16.mxu0 0
        %315 = vmatpush2.bf16.msra.mxu0 0
        %316 = vmatprep.subr.bf16.mxu0 0
        %317 = vmatpush2.bf16.msra.mxu0 0
        %318 = vmatprep.subr.bf16.mxu0 0
        %319 = vmatpush2.bf16.msra.mxu0 0
        %320 = vmatprep.subr.bf16.mxu0 0
        %321 = vmatpush2.bf16.msra.mxu0 0
        %322 = vmatprep.mubr.bf16.mxu0 0
        %323 = vmatmul.mubr.bf16.gmra.mxu0 %v281
        %v324 = vpop.f32.mrf.mxu0
        %v325 = vadd.f32 %v242, %v324
        %v326 = vpop.f32.mrf.mxu0
        %v327 = vadd.f32 %v242, %v326
        %v328 = vpop.f32.mrf.mxu0
        %v329 = vadd.f32 %v247, %v328
        %v330 = vpop.f32.mrf.mxu0
        %v331 = vadd.f32 %v247, %v330
        %332 = vdwg.mxu0
        %vm333 = vcmp.ge.f32.partialorder %v325, 0.0
        %vm334 = vcmp.ge.f32.partialorder %v327, 0.0
        %vm335 = vcmp.ge.f32.partialorder %v329, 0.0
        %vm336 = vcmp.ge.f32.partialorder %v331, 0.0
        %v337 = vstv %s229
        %v338 = vmul.f32 %v337, %v325
        %v339 = vmul.f32 %v337, %v327
        %v340 = vmul.f32 %v337, %v329
        %v341 = vmul.f32 %v337, %v331
        %v342 = vsel %vm333, %v325, %v338
        %v343 = vsel %vm334, %v327, %v339
        %v344 = vsel %vm335, %v329, %v340
        %v345 = vsel %vm336, %v331, %v341
        %346 = vst [vmem:[%s216] sm:$0xff] %v342
        %347 = vst [vmem:[%s216 + $0x8] sm:$0xff] %v343
        %348 = vst [vmem:[%s216 + $0x10] sm:$0xff] %v344
        %349 = vst [vmem:[%s216 + $0x18] sm:$0xff] %v345
        %s350 = sand.u32 %s132, 1
        %s351 = scalar_lea.sflag [#allocation4], %s350
        %s352 = sand.u32 %s132, 1
        %s353 = smul.addr %s352, 32
        %s354 = scalar_lea.vmem [#allocation3], %s353
        // Predicated region
        $region37: #{tpu_custom_call.1} parent=35 // pred_check
          %p355 = pneg %p142
        $region38: #{tpu_custom_call.1} parent=35 // pred_check_branch
          %357 = sbr.rel (%p355) target = $region40
        $region39: #{tpu_custom_call.1} parent=35 // pred_region
          %s358 = smul.u32 2, %s24
          %s360 = ssub.s32 512, 512
          %361 = vsyncadd %s351, %s360
          %s362 = smul.addr %s23, 4
          %s363 = sadd.s32 %s358, %s362
          %s364 = smul.addr %s363, 128
          %s365 = scalar_lea.hbm %s4, %s364
          %s366 = sshll.u32 %s354, 4
          %s367 = int_to_ptr.vmem [resolvable:$true] %s366
          %372 = dma.vmem_to_hbm [thread:$0]  %s367, 512, %s365, %s351, 256, 256, 16
        $region40: #{tpu_custom_call.1} parent=35 // pred_fallthru
          _
      $region36: #{tpu_custom_call.1} parent=5 // pred_fallthru
        _
      %p373 = scmp.le.s32.totalorder 2, %s14
      // Predicated region
      $region41: #{tpu_custom_call.1} parent=5 // pred_check
        %p374 = pneg %p373
      $region42: #{tpu_custom_call.1} parent=5 // pred_check_branch
        %376 = sbr.rel (%p374) target = $region44
      $region43: #{tpu_custom_call.1} parent=5 // pred_region
        %s377 = ssub.s32 %s14, 2
        // Predicated region
        $region45: #{tpu_custom_call.1} parent=43 // pred_check
          %p378 = pneg %p148
        $region46: #{tpu_custom_call.1} parent=43 // pred_check_branch
          %380 = sbr.rel (%p378) target = $region48
        $region47: #{tpu_custom_call.1} parent=43 // pred_region
          %s381 = sand.u32 %s133, 1
          %s382 = scalar_lea.sflag [#allocation4], %s381
          %s383 = sand.u32 %s133, 1
          %s384 = smul.addr %s383, 32
          %s385 = scalar_lea.vmem [#allocation3], %s384
          %386 = dma.done %s382, 512
        $region48: #{tpu_custom_call.1} parent=43 // pred_fallthru
          _
      $region44: #{tpu_custom_call.1} parent=5 // pred_fallthru
        _
    $region6: #{tpu_custom_call.1} parent=1 // loop_footer
      %s18 = sadd.s32 1, %s14
    $region7: #{tpu_custom_call.1} parent=1 // loop_footer_branch
      %13 = sbr.rel target = $region3
    $region8: #{tpu_custom_call.1} parent=1 // loop_exit
      _
    %387 = vsyncpa [#allocation4], 1
    %s388 = scalar_lea.sflag [#allocation4], 1
    %389 = vsyncpa %s388, 1

</llo_original>
